<compile_context>
chip_gen: v6e
topology: v6e:2x2x1
jax: 0.10.0
libtpu: 0.0.40
codegen_flags: <defaults>
</compile_context>

<pallas_src>
import functools

import jax
import jax.numpy as jnp
from jax.experimental import pallas as pl
from jax.experimental.pallas import tpu as pltpu


def _conflictual_kernel(class_idx_ref, logits_ref, targets_ref, out_ref, acc_ref,
                        *, reg_weight, reduction, n_rows, tile_n):
    step = pl.program_id(0)

    @pl.when(step == 0)
    def _init():
        acc_ref[...] = jnp.zeros_like(acc_ref)

    x = logits_ref[...]                                     # (tile_n, C), input dtype
    tn, c = x.shape

    # Row max in the input dtype; upcast only the shifted values fed to exp.
    row_max = jnp.max(x, axis=-1, keepdims=True)            # (tile_n, 1)
    shifted = (x - row_max).astype(jnp.float32)             # (tile_n, C) f32
    sumexp = jnp.sum(jnp.exp(shifted), axis=-1, keepdims=True)   # (tile_n, 1)

    # Fused one-hot weights: 1 at the target class, +reg_weight at class_index.
    class_ids = jax.lax.broadcasted_iota(jnp.int32, (tn, c), 1)
    w = (jnp.where(class_ids == targets_ref[...], 1.0, 0.0)
         + jnp.where(class_ids == class_idx_ref[0], reg_weight, 0.0))
    gathered = jnp.sum(w * shifted, axis=-1, keepdims=True)      # (tile_n, 1)

    # per_row = ce + reg_weight * reg  (row-max terms cancel: sum(w) == 1+rw)
    per_row = (1.0 + reg_weight) * jnp.log(sumexp) - gathered    # (tile_n, 1) f32

    # Mask rows of the (possibly padded) remainder tile.
    row_ids = step * tile_n + jax.lax.broadcasted_iota(jnp.int32, (tn, 1), 0)
    per_row = jnp.where(row_ids < n_rows, per_row, 0.0)

    acc_ref[...] += jnp.sum(per_row, axis=0, keepdims=True)      # (1, 1)

    @pl.when(step == pl.num_programs(0) - 1)
    def _finalize():
        total = acc_ref[...]
        if reduction == "mean":
            total = total * (1.0 / n_rows)
        out_ref[...] = total


def _pick_tile_n(n, c, itemsize,
                 vmem_budget_bytes=4 * 1024 * 1024, max_tile=1024):
    """Biggest row tile (multiple of 8, <= max_tile) whose logits block stays
    within ~4 MiB, so 2x double-buffered inputs fit even v5e's 16 MiB scoped
    VMEM default."""
    rows = vmem_budget_bytes // max(1, c * itemsize)
    rows = min(rows, max_tile)
    rows = max(8, (rows // 8) * 8)
    if rows >= n:
        return n                    # single full-extent block (always legal)
    return rows                     # multiple of 8 -> legal tiled block


def conflictual_loss(logits, targets, class_idx, *, reg_weight=1.0,
                     reduction="mean", tile_n=None):
    """Pallas implementation of ConflictualLoss.forward (scalar reductions)."""
    if reduction not in ("mean", "sum"):
        raise ValueError(f"{reduction} is not supported by this kernel.")
    n, c = logits.shape
    itemsize = jnp.dtype(logits.dtype).itemsize

    if tile_n is None:
        tile_n = _pick_tile_n(n, c, itemsize)
    else:
        tile_n = min(int(tile_n), n)
        if tile_n < n and tile_n % 8 != 0:
            raise ValueError("tile_n must be a multiple of 8 when tiling the batch axis.")
    grid_n = pl.cdiv(n, tile_n)

    targets2d = targets.astype(jnp.int32).reshape(n, 1)
    class_idx = class_idx.astype(jnp.int32).reshape(1)

    kernel = functools.partial(
        _conflictual_kernel,
        reg_weight=float(reg_weight),
        reduction=reduction,
        n_rows=n,
        tile_n=tile_n,
    )

    cost = pl.CostEstimate(
        flops=6 * n * c,
        transcendentals=n * c + n,
        bytes_accessed=n * c * itemsize + n * 4 + 4,
    )

    out = pl.pallas_call(
        kernel,
        out_shape=jax.ShapeDtypeStruct((1, 1), jnp.float32),
        grid_spec=pltpu.PrefetchScalarGridSpec(
            num_scalar_prefetch=1,                          # class_idx lands in SMEM
            grid=(grid_n,),
            in_specs=[
                pl.BlockSpec((tile_n, c), lambda i, cidx: (i, 0)),   # logits tile
                pl.BlockSpec((tile_n, 1), lambda i, cidx: (i, 0)),   # targets tile
            ],
            out_specs=pl.BlockSpec((1, 1), lambda i, cidx: (0, 0)),  # resident scalar
            scratch_shapes=[pltpu.VMEM((1, 1), jnp.float32)],        # accumulator
        ),
        compiler_params=pltpu.CompilerParams(
            dimension_semantics=("arbitrary",),             # reduction axis
        ),
        cost_estimate=cost,
    )(class_idx, logits, targets2d)
    return out[0, 0]


def _reference(logits, targets, class_idx, reg_weight=1.0, reduction="mean"):
    logp = jax.nn.log_softmax(logits.astype(jnp.float32), axis=1)
    ce = -jnp.take_along_axis(logp, targets[:, None].astype(jnp.int32), axis=1)[:, 0]
    reg = -logp[:, class_idx[0]]
    if reduction == "mean":
        return jnp.mean(ce) + reg_weight * jnp.mean(reg)
    return jnp.sum(ce) + reg_weight * jnp.sum(reg)


if __name__ == "__main__":
    key = jax.random.PRNGKey(0)
    k_logits, k_targets, k_cls, k_rest = jax.random.split(key, 4)

    # Small shape: single full-extent tile.
    N, C = 8, 16
    logits = jax.random.normal(k_logits, (N, C), dtype=jnp.float32)
    targets = jax.random.randint(k_targets, (N,), 0, C, dtype=jnp.int32)
    # torch.randint(0, C, (1,)) equivalent, drawn deterministically here.
    class_idx = jax.random.randint(k_cls, (1,), 0, C, dtype=jnp.int32)

    out = jax.block_until_ready(
        conflictual_loss(logits, targets, class_idx, reg_weight=1.0, reduction="mean"))
    ref = _reference(logits, targets, class_idx, 1.0, "mean")
    assert jnp.allclose(out, ref, rtol=1e-5, atol=1e-5), (out, ref)

    out_sum = jax.block_until_ready(
        conflictual_loss(logits, targets, class_idx, reg_weight=0.5, reduction="sum"))
    ref_sum = _reference(logits, targets, class_idx, 0.5, "sum")
    assert jnp.allclose(out_sum, ref_sum, rtol=1e-5, atol=1e-4), (out_sum, ref_sum)

    # Tiled path with a remainder tile (exercises pipelining + row masking).
    N2, C2 = 300, 16
    ka, kb = jax.random.split(k_rest)
    logits2 = jax.random.normal(ka, (N2, C2), dtype=jnp.float32)
    targets2 = jax.random.randint(kb, (N2,), 0, C2, dtype=jnp.int32)
    out2 = jax.block_until_ready(
        conflictual_loss(logits2, targets2, class_idx,
                         reg_weight=1.0, reduction="mean", tile_n=128))
    ref2 = _reference(logits2, targets2, class_idx, 1.0, "mean")
    assert jnp.allclose(out2, ref2, rtol=1e-5, atol=1e-5), (out2, ref2)

    print("KERNEL_OK")
</pallas_src>

<mosaic_0001>
module attributes {stable_mosaic.version = 11 : i64} {
  func.func @_conflictual_kernel(%arg0: i32, %arg1: memref<1xi32, #tpu.memory_space<smem>>, %arg2: memref<8x16xf32, #tpu.memory_space<vmem>>, %arg3: memref<8x1xi32, #tpu.memory_space<vmem>>, %arg4: memref<1x1xf32, #tpu.memory_space<vmem>>, %arg5: memref<1x1xf32, #tpu.memory_space<vmem>>) attributes {dimension_semantics = [#tpu.dimension_semantics<arbitrary>], iteration_bounds = array<i64: 1>, scalar_prefetch = 1 : i64, scratch_operands = 1 : i64, tpu.core_type = #tpu.core_type<tc>, window_params = [{transform_indices = @transform_0, window_bounds = array<i64: 8, 16>}, {transform_indices = @transform_1, window_bounds = array<i64: 8, 1>}, {pipeline_mode = #tpu.pipeline_mode<synchronous>, transform_indices = @transform_2, window_bounds = array<i64: 1, 1>}]} {
    %c0_i32 = arith.constant 0 : i32
    %0 = arith.cmpi eq, %arg0, %c0_i32 : i32
    %1 = arith.extui %0 : i1 to i32
    %c0_i32_0 = arith.constant 0 : i32
    %2 = arith.cmpi ne, %1, %c0_i32_0 : i32
    scf.if %2 {
      %cst_21 = arith.constant 0.000000e+00 : f32
      %48 = vector.broadcast %cst_21 : f32 to vector<1x1xf32>
      %c0_22 = arith.constant 0 : index
      %c0_23 = arith.constant 0 : index
      %49 = vector.load %arg5[%c0_22, %c0_23] : memref<1x1xf32, #tpu.memory_space<vmem>>, vector<1x1xf32>
      tpu.vector_store %arg5[%c0_22, %c0_23], %48 {strides = array<i32>} : memref<1x1xf32, #tpu.memory_space<vmem>>, vector<1x1xf32>,
    } else {
    }
    %c0 = arith.constant 0 : index
    %c0_1 = arith.constant 0 : index
    %3 = vector.load %arg2[%c0, %c0_1] : memref<8x16xf32, #tpu.memory_space<vmem>>, vector<8x16xf32>
    %cst = arith.constant dense<0xFF800000> : vector<8xf32>
    %4 = vector.multi_reduction <maximumf>, %3, %cst [1] : vector<8x16xf32> to vector<8xf32>
    %5 = vector.shape_cast %4 : vector<8xf32> to vector<8x1xf32>
    %6 = vector.broadcast %5 : vector<8x1xf32> to vector<8x16xf32>
    %7 = arith.subf %3, %6 : vector<8x16xf32>
    %8 = math.exp %7 : vector<8x16xf32>
    %cst_2 = arith.constant dense<0.000000e+00> : vector<8xf32>
    %9 = vector.multi_reduction <add>, %8, %cst_2 [1] : vector<8x16xf32> to vector<8xf32>
    %10 = vector.shape_cast %9 : vector<8xf32> to vector<8x1xf32>
    %11 = tpu.iota {dimensions = array<i32: 1>} : vector<8x16xi32>
    %c0_3 = arith.constant 0 : index
    %c0_4 = arith.constant 0 : index
    %12 = vector.load %arg3[%c0_3, %c0_4] : memref<8x1xi32, #tpu.memory_space<vmem>>, vector<8x1xi32>
    %13 = vector.broadcast %12 : vector<8x1xi32> to vector<8x16xi32>
    %14 = arith.cmpi eq, %11, %13 : vector<8x16xi32>
    %cst_5 = arith.constant 1.000000e+00 : f32
    %cst_6 = arith.constant 0.000000e+00 : f32
    %15 = vector.broadcast %cst_5 : f32 to vector<8x16xf32>
    %16 = vector.broadcast %cst_6 : f32 to vector<8x16xf32>
    %17 = arith.select %14, %15, %16 : vector<8x16xi1>, vector<8x16xf32>
    %c0_7 = arith.constant 0 : index
    %18 = memref.load %arg1[%c0_7] : memref<1xi32, #tpu.memory_space<smem>>
    %19 = vector.broadcast %18 : i32 to vector<8x16xi32>
    %20 = arith.cmpi eq, %11, %19 : vector<8x16xi32>
    %cst_8 = arith.constant 1.000000e+00 : f32
    %cst_9 = arith.constant 0.000000e+00 : f32
    %21 = vector.broadcast %cst_8 : f32 to vector<8x16xf32>
    %22 = vector.broadcast %cst_9 : f32 to vector<8x16xf32>
    %23 = arith.select %20, %21, %22 : vector<8x16xi1>, vector<8x16xf32>
    %24 = arith.addf %17, %23 : vector<8x16xf32>
    %25 = arith.mulf %24, %7 : vector<8x16xf32>
    %cst_10 = arith.constant dense<0.000000e+00> : vector<8xf32>
    %26 = vector.multi_reduction <add>, %25, %cst_10 [1] : vector<8x16xf32> to vector<8xf32>
    %27 = vector.shape_cast %26 : vector<8xf32> to vector<8x1xf32>
    %28 = math.log %10 : vector<8x1xf32>
    %cst_11 = arith.constant 2.000000e+00 : f32
    %29 = vector.broadcast %cst_11 : f32 to vector<8x1xf32>
    %30 = arith.mulf %29, %28 : vector<8x1xf32>
    %31 = arith.subf %30, %27 : vector<8x1xf32>
    %c8_i32 = arith.constant 8 : i32
    %32 = arith.muli %arg0, %c8_i32 : i32
    %33 = tpu.iota {dimensions = array<i32: 0>} : vector<8x1xi32>
    %34 = vector.broadcast %32 : i32 to vector<8x1xi32>
    %35 = arith.addi %34, %33 : vector<8x1xi32>
    %c8_i32_12 = arith.constant 8 : i32
    %36 = vector.broadcast %c8_i32_12 : i32 to vector<8x1xi32>
    %37 = arith.cmpi slt, %35, %36 : vector<8x1xi32>
    %cst_13 = arith.constant 0.000000e+00 : f32
    %38 = vector.broadcast %cst_13 : f32 to vector<8x1xf32>
    %39 = arith.select %37, %31, %38 : vector<8x1xi1>, vector<8x1xf32>
    %c0_14 = arith.constant 0 : index
    %c0_15 = arith.constant 0 : index
    %40 = vector.load %arg5[%c0_14, %c0_15] : memref<1x1xf32, #tpu.memory_space<vmem>>, vector<1x1xf32>
    %cst_16 = arith.constant dense<0.000000e+00> : vector<1xf32>
    %41 = vector.multi_reduction <add>, %39, %cst_16 [0] : vector<8x1xf32> to vector<1xf32>
    %42 = vector.shape_cast %41 : vector<1xf32> to vector<1x1xf32>
    %43 = arith.addf %40, %42 : vector<1x1xf32>
    %c0_17 = arith.constant 0 : index
    %c0_18 = arith.constant 0 : index
    %44 = vector.load %arg5[%c0_17, %c0_18] : memref<1x1xf32, #tpu.memory_space<vmem>>, vector<1x1xf32>
    tpu.vector_store %arg5[%c0_17, %c0_18], %43 {strides = array<i32>} : memref<1x1xf32, #tpu.memory_space<vmem>>, vector<1x1xf32>,
    %c0_i32_19 = arith.constant 0 : i32
    %45 = arith.cmpi eq, %arg0, %c0_i32_19 : i32
    %46 = arith.extui %45 : i1 to i32
    %c0_i32_20 = arith.constant 0 : i32
    %47 = arith.cmpi ne, %46, %c0_i32_20 : i32
    scf.if %47 {
      %c0_21 = arith.constant 0 : index
      %c0_22 = arith.constant 0 : index
      %48 = vector.load %arg5[%c0_21, %c0_22] : memref<1x1xf32, #tpu.memory_space<vmem>>, vector<1x1xf32>
      %cst_23 = arith.constant 1.250000e-01 : f32
      %49 = vector.broadcast %cst_23 : f32 to vector<1x1xf32>
      %50 = arith.mulf %48, %49 : vector<1x1xf32>
      %c0_24 = arith.constant 0 : index
      %c0_25 = arith.constant 0 : index
      %51 = vector.load %arg4[%c0_24, %c0_25] : memref<1x1xf32, #tpu.memory_space<vmem>>, vector<1x1xf32>
      tpu.vector_store %arg4[%c0_24, %c0_25], %50 {strides = array<i32>} : memref<1x1xf32, #tpu.memory_space<vmem>>, vector<1x1xf32>,
    } else {
    }
    return
  }
  func.func @transform_0(%arg0: i32, %arg1: memref<1xi32, #tpu.memory_space<smem>>) -> (i32, i32) {
    %c0_i32 = arith.constant 0 : i32
    %c0_i32_0 = arith.constant 0 : i32
    return %arg0, %c0_i32 : i32, i32
  }
  func.func @transform_1(%arg0: i32, %arg1: memref<1xi32, #tpu.memory_space<smem>>) -> (i32, i32) {
    %c0_i32 = arith.constant 0 : i32
    %c0_i32_0 = arith.constant 0 : i32
    return %arg0, %c0_i32 : i32, i32
  }
  func.func @transform_2(%arg0: i32, %arg1: memref<1xi32, #tpu.memory_space<smem>>) -> (i32, i32) {
    %c0_i32 = arith.constant 0 : i32
    %c0_i32_0 = arith.constant 0 : i32
    %c0_i32_1 = arith.constant 0 : i32
    return %c0_i32, %c0_i32_0 : i32, i32
  }
}

</mosaic_0001>

<llo_original>
// kernel: tpu_custom_call.1
$region0: #{tpu_custom_call.1}
  #allocation0 [shape = 'u32[]', space=smem, size = 0x4, offset = 0x4, fixed_abs, tag = 'smem constant byte address 0x4 - core index']
  #allocation1 [shape = 'u32[144,128]{1,0:T(1,128)}', space=vmem, size = 0x12000, scoped, tag = 'internal scratch']
  #allocation2 [shape = 'f32[1,1]{1,0:T(1,128)}', space=vmem, size = 0x200, scoped, tag = 'scratch operand']
  #allocation3 [shape = 's32[1]{0}', space=sflag, size = 0x4, scoped, tag = 'scoped memory for tpu_custom_call.1']
  #allocation4 [shape = 's32[1]{0:T(128)S(6)}', space=smem, size = 0x200, scoped, tag = 'prefetched SMEM operand 0']
  %s0 = inlined_call_operand.<no memory space> [shape: s32[1], index: 0, kind: input, shape index: {}]
  %s1 = inlined_call_operand.vmem [shape: f32[8,16], index: 1, kind: input, shape index: {}]
  %s2 = inlined_call_operand.vmem [shape: s32[8,1], index: 2, kind: input, shape index: {}]
  %s3 = inlined_call_operand.hbm [shape: f32[1,1], index: 3, kind: output, shape index: {}]
  %s4 = sld [smem:[#allocation0]]
  $region26: #{tpu_custom_call.1} parent=0
    _
  %s6 = ssub.s32 1, %s4
  %s7 = scalar_select 0, %s6, %s4
  %8 = sst [smem:[#allocation4]] %s0
  $region1: #{tpu_custom_call.1} parent=0
    #allocation5 [shape = 'u8[512]{0}', space=vmem, size = 0x400, scoped, tag = 'output window, operand 0, single buffered']
    #allocation6 [shape = 's32[1]{0}', space=sflag, size = 0x4, scoped, tag = 'scoped memory for tpu_custom_call.1']
    %9 = vsyncpa [#allocation6], 0
    // Predicated region
    $region2: #{tpu_custom_call.1} parent=1 // pred_check
      _
    $region3: #{tpu_custom_call.1} parent=1 // pred_check_branch
      %11 = sbr.rel (0) target = $region5
    $region4: #{tpu_custom_call.1} parent=1 // pred_region
      _
    $region5: #{tpu_custom_call.1} parent=1 // pred_fallthru
      _
    // Predicated region
    $region6: #{tpu_custom_call.1} parent=1 // pred_check
      _
    $region7: #{tpu_custom_call.1} parent=1 // pred_check_branch
      %13 = sbr.rel (0) target = $region9
    $region8: #{tpu_custom_call.1} parent=1 // pred_region
      _
    $region9: #{tpu_custom_call.1} parent=1 // pred_fallthru
      _
    %p14 = scmp.eq.s32.totalorder 0, 0
    // Predicated region
    $region10: #{tpu_custom_call.1} parent=1 // pred_check
      %p15 = pneg %p14
    $region11: #{tpu_custom_call.1} parent=1 // pred_check_branch
      %17 = sbr.rel (%p15) target = $region13
    $region12: #{tpu_custom_call.1} parent=1 // pred_region
      %vm18 = vcmask 0
      %19 = vst.msk [vmem:[#allocation2] sm:$0x1] %vm18, 0.0
    $region13: #{tpu_custom_call.1} parent=1 // pred_fallthru
      _
    %v20 = vld [vmem:[%s1] sm:$0xff]
    %vm21 = vcmask 130048
    %v22 = vsel %vm21, %v20, -inf
    %23 = vmax.xlane.f32.xlu0 %v22
    %v24 = vpop.xlane.xlu0 %23
    %v25 = vsub.f32 %v20, %v24
    %v26 = vmul.f32 %v25, 1.442695
    %v27 = vpow.pop %v26
    %v28 = vsel %vm21, %v27, 0.0
    %29 = vadd.xlane.f32.xlu0 %v28
    %v30 = vpop.xlane.xlu0 %29
    %v31 = vlaneseq
    %v32 = vand.u32 %v31, 127
    %v33 = vld [vmem:[%s2] sm:$0xff]
    %34 = vset.pattern.permute.xlu0 0
    %35 = vperm.xlu0 %34, %v33
    %v36 = vpop.permute.xlu0 %35
    %vm37 = vcmp.eq.s32.totalorder %v32, %v36
    %v38 = vsel %vm37, 1.0, 0.0
    %s39 = sld [smem:[#allocation4]]
    %v40 = vstv %s39
    %vm41 = vcmp.eq.s32.totalorder %v32, %v40
    %v42 = vsel %vm41, 1.0, 0.0
    %v43 = vadd.f32 %v38, %v42
    %v44 = vmul.f32 %v43, %v25
    %v45 = vsel %vm21, %v44, 0.0
    %46 = vadd.xlane.f32.xlu0 %v45
    %v47 = vpop.xlane.xlu0 %46
    %v48 = vlog2.pop %v30
    %v49 = vmul.f32 %v48, 0.6931472
    %v50 = vmul.f32 %v49, 2.0
    %v51 = vsub.f32 %v50, %v47
    %s52 = smul.u32 0, 8
    %v53 = vlaneseq
    %v54 = vshrl.u32 %v53, 7
    %v55 = vstv %s52
    %v56 = vadd.s32 %v55, %v54
    %vm57 = vcmp.lt.s32.totalorder %v56, 8
    %v58 = vsel %vm57, %v51, 0.0
    %v59 = vld [vmem:[#allocation2] sm:$0x1]
    %v60 = vrot.slane %v58, 4
    %v61 = vadd.f32 %v58, %v60
    %v62 = vrot.slane %v61, 2
    %v63 = vadd.f32 %v61, %v62
    %v64 = vrot.slane %v63, 1
    %v65 = vadd.f32 %v63, %v64
    %v66 = vadd.f32 %v59, %v65
    %vm67 = vcmask 0
    %68 = vst.msk [vmem:[#allocation2] sm:$0x1] %vm67, %v66
    // Predicated region
    $region14: #{tpu_custom_call.1} parent=1 // pred_check
      %p69 = pneg %p14
    $region15: #{tpu_custom_call.1} parent=1 // pred_check_branch
      %71 = sbr.rel (%p69) target = $region17
    $region16: #{tpu_custom_call.1} parent=1 // pred_region
      %v72 = vld [vmem:[#allocation2] sm:$0x1]
      %v73 = vmul.f32 %v72, 0.125
      %74 = vst.msk [vmem:[#allocation5] sm:$0x1] %vm67, %v73
    $region17: #{tpu_custom_call.1} parent=1 // pred_fallthru
      _
    // Predicated region
    $region18: #{tpu_custom_call.1} parent=1 // pred_check
      _
    $region19: #{tpu_custom_call.1} parent=1 // pred_check_branch
      %76 = sbr.rel (0) target = $region21
    $region20: #{tpu_custom_call.1} parent=1 // pred_region
      %s78 = ssub.s32 16, 16
      %79 = vsyncadd [#allocation6], %s78
      %s81 = sshll.u32 [#allocation5], 4
      %s82 = int_to_ptr.vmem [resolvable:$true] %s81
      %84 = dma.vmem_to_hbm [thread:$0]  %s82, 16, %s3, [#allocation6]
    $region21: #{tpu_custom_call.1} parent=1 // pred_fallthru
      _
    // Predicated region
    $region22: #{tpu_custom_call.1} parent=1 // pred_check
      _
    $region23: #{tpu_custom_call.1} parent=1 // pred_check_branch
      %86 = sbr.rel (0) target = $region25
    $region24: #{tpu_custom_call.1} parent=1 // pred_region
      %87 = dma.done [#allocation6], 16
    $region25: #{tpu_custom_call.1} parent=1 // pred_fallthru
      _
    %88 = vsyncpa [#allocation6], 1

</llo_original>
